<compile_context>
chip_gen: v6e
topology: v6e:2x2x1
jax: 0.10.0
libtpu: 0.0.40
codegen_flags: <defaults>
</compile_context>

<pallas_src>
import functools

import jax
import jax.numpy as jnp
from jax.experimental import pallas as pl
from jax.experimental.pallas import tpu as pltpu


# ----------------------------------------------------------------------------
# Fused Pallas kernel:  h = x; for each layer: h = act(h @ W + b); o = h
# All refs are whole-array VMEM residents; intermediates never leave the chip.
# ----------------------------------------------------------------------------
def _fused_mlp_kernel(*refs, n_layers: int):
    # refs = (x_ref, w0_ref, b0_ref, w1_ref, b1_ref, ..., o_ref)
    x_ref = refs[0]
    o_ref = refs[-1]
    wb = refs[1:-1]

    h = x_ref[...]
    for li in range(n_layers):
        w = wb[2 * li][...]        # (Din, Dout), already transposed at prep time
        b = wb[2 * li + 1][...]    # (B, Dout), pre-broadcast at prep time
        h = jnp.dot(h, w, preferred_element_type=jnp.float32) + b
        if li < n_layers - 1:      # final Linear has no activation
            h = jnp.maximum(h, 0.0)
    o_ref[...] = h.astype(o_ref.dtype)


def fused_mlp_pallas(x, prepared_params):
    """x: [B, Din] f32. prepared_params: list of (w_t[in,out] f32, b[B,out] f32)."""
    B, _ = x.shape
    n_layers = len(prepared_params)
    out_dim = prepared_params[-1][0].shape[1]

    flat_params = []
    flops = 0
    bytes_accessed = x.size * x.dtype.itemsize
    for w_t, b in prepared_params:
        flat_params.append(w_t)
        flat_params.append(b)
        flops += 2 * B * w_t.shape[0] * w_t.shape[1] + B * w_t.shape[1]
        bytes_accessed += w_t.size * w_t.dtype.itemsize
        bytes_accessed += b.size * b.dtype.itemsize
    bytes_accessed += B * out_dim * 4

    vmem_spec = pl.BlockSpec(memory_space=pltpu.MemorySpace.VMEM)
    kernel = functools.partial(_fused_mlp_kernel, n_layers=n_layers)
    return pl.pallas_call(
        kernel,
        out_shape=jax.ShapeDtypeStruct((B, out_dim), jnp.float32),
        # Grid-less call: single invocation, whole arrays copied into VMEM,
        # no pipeline machinery, no double-buffering of ~tens-of-KiB operands.
        in_specs=[vmem_spec] * (1 + 2 * n_layers),
        out_specs=vmem_spec,
        cost_estimate=pl.CostEstimate(
            flops=flops, transcendentals=0, bytes_accessed=bytes_accessed
        ),
    )(x, *flat_params)


# ----------------------------------------------------------------------------
# One-time param preparation (hoisted out of the forward path):
#   PyTorch layout (w[out,in], b[out])  ->  (w_t[in,out], b_bcast[batch,out])
# No padding: full-extent VMEM blocks are legal at the true shapes, and the
# unpadded weights minimize HBM->VMEM DMA bytes (the dominant per-call cost).
# ----------------------------------------------------------------------------
def prepare_fc_params(params, batch):
    prepared = []
    for w, b in params:
        w_t = jnp.asarray(w.T, dtype=jnp.float32)                    # (in, out)
        b_b = jnp.tile(jnp.asarray(b, jnp.float32).reshape(1, -1),   # (batch, out)
                       (batch, 1))
        prepared.append((w_t, b_b))
    return prepared


# ----------------------------------------------------------------------------
# ApproxModel (model_type='fc') forward — no per-call pad/slice wrapper ops.
# ----------------------------------------------------------------------------
def approx_model_fc_forward(x, prepared_params):
    return fused_mlp_pallas(x, prepared_params)


# ----------------------------------------------------------------------------
# Deterministic parameter init (matches ApproxModel.init_weights semantics):
#   kaiming_normal_ on Linear weights (std = sqrt(2 / fan_in)), biases = 0.
# ----------------------------------------------------------------------------
def init_fc_params(key, dims):
    params = []
    for i in range(len(dims) - 1):
        fan_in, fan_out = dims[i], dims[i + 1]
        key, sub = jax.random.split(key)
        std = (2.0 / fan_in) ** 0.5
        w = jax.random.normal(sub, (fan_out, fan_in), dtype=jnp.float32) * std
        b = jnp.zeros((fan_out,), dtype=jnp.float32)
        params.append((w, b))
    return params


def fc_reference(x, params):
    """Pure-JAX reference of the PyTorch FC forward (Linear+ReLU, last Linear plain)."""
    h = x
    for li, (w, b) in enumerate(params):
        h = h @ w.T + b
        if li < len(params) - 1:
            h = jnp.maximum(h, 0.0)
    return h


if __name__ == "__main__":
    # Small shapes consistent with an FC forward: batch=8, in=32, hidden=64, out=32.
    # TODO(synk): FC's exact layer widths are not given in the reference source;
    # a 3-layer MLP (32 -> 64 -> 64 -> 32) with ReLU is used as the FC model.
    key = jax.random.PRNGKey(0)
    key, kx = jax.random.split(key)
    batch, in_dim, hidden, out_dim = 8, 32, 64, 32

    x = jax.random.normal(kx, (batch, in_dim), dtype=jnp.float32)
    params = init_fc_params(key, (in_dim, hidden, hidden, out_dim))

    # One-time prep (transpose + bias pre-broadcast) — NOT part of the
    # per-forward cost.
    prepared = prepare_fc_params(params, batch)

    y = approx_model_fc_forward(x, prepared)
    jax.block_until_ready(y)

    assert y.shape == (batch, out_dim) and y.dtype == jnp.float32
    y_ref = fc_reference(x, params)
    assert jnp.allclose(y, y_ref, rtol=1e-5, atol=1e-5), "mismatch vs reference"
    print("KERNEL_OK")
</pallas_src>

<mosaic_0001>
module attributes {stable_mosaic.version = 11 : i64} {
  func.func @_fused_mlp_kernel(%arg0: memref<8x32xf32, #tpu.memory_space<vmem>>, %arg1: memref<32x64xf32, #tpu.memory_space<vmem>>, %arg2: memref<8x64xf32, #tpu.memory_space<vmem>>, %arg3: memref<64x64xf32, #tpu.memory_space<vmem>>, %arg4: memref<8x64xf32, #tpu.memory_space<vmem>>, %arg5: memref<64x32xf32, #tpu.memory_space<vmem>>, %arg6: memref<8x32xf32, #tpu.memory_space<vmem>>, %arg7: memref<8x32xf32, #tpu.memory_space<vmem>>) attributes {dimension_semantics = [], scalar_prefetch = 0 : i64, scratch_operands = 0 : i64, tpu.core_type = #tpu.core_type<tc>} {
    %c0 = arith.constant 0 : index
    %c0_0 = arith.constant 0 : index
    %0 = vector.load %arg0[%c0, %c0_0] : memref<8x32xf32, #tpu.memory_space<vmem>>, vector<8x32xf32>
    %c0_1 = arith.constant 0 : index
    %c0_2 = arith.constant 0 : index
    %1 = vector.load %arg1[%c0_1, %c0_2] : memref<32x64xf32, #tpu.memory_space<vmem>>, vector<32x64xf32>
    %c0_3 = arith.constant 0 : index
    %c0_4 = arith.constant 0 : index
    %2 = vector.load %arg2[%c0_3, %c0_4] : memref<8x64xf32, #tpu.memory_space<vmem>>, vector<8x64xf32>
    %cst = arith.constant dense<0.000000e+00> : vector<8x64xf32>
    %3 = tpu.matmul %0, %1, %cst {dimension_numbers = #tpu.dot_dimension_numbers<[1], [0], [0], [1], [0, 0, 1, 1], [], []>} : vector<8x32xf32>, vector<32x64xf32>, vector<8x64xf32> -> vector<8x64xf32>
    %4 = arith.addf %3, %2 : vector<8x64xf32>
    %cst_5 = arith.constant 0.000000e+00 : f32
    %5 = vector.broadcast %cst_5 : f32 to vector<8x64xf32>
    %6 = arith.maximumf %4, %5 : vector<8x64xf32>
    %c0_6 = arith.constant 0 : index
    %c0_7 = arith.constant 0 : index
    %7 = vector.load %arg3[%c0_6, %c0_7] : memref<64x64xf32, #tpu.memory_space<vmem>>, vector<64x64xf32>
    %c0_8 = arith.constant 0 : index
    %c0_9 = arith.constant 0 : index
    %8 = vector.load %arg4[%c0_8, %c0_9] : memref<8x64xf32, #tpu.memory_space<vmem>>, vector<8x64xf32>
    %cst_10 = arith.constant dense<0.000000e+00> : vector<8x64xf32>
    %9 = tpu.matmul %6, %7, %cst_10 {dimension_numbers = #tpu.dot_dimension_numbers<[1], [0], [0], [1], [0, 0, 1, 1], [], []>} : vector<8x64xf32>, vector<64x64xf32>, vector<8x64xf32> -> vector<8x64xf32>
    %10 = arith.addf %9, %8 : vector<8x64xf32>
    %cst_11 = arith.constant 0.000000e+00 : f32
    %11 = vector.broadcast %cst_11 : f32 to vector<8x64xf32>
    %12 = arith.maximumf %10, %11 : vector<8x64xf32>
    %c0_12 = arith.constant 0 : index
    %c0_13 = arith.constant 0 : index
    %13 = vector.load %arg5[%c0_12, %c0_13] : memref<64x32xf32, #tpu.memory_space<vmem>>, vector<64x32xf32>
    %c0_14 = arith.constant 0 : index
    %c0_15 = arith.constant 0 : index
    %14 = vector.load %arg6[%c0_14, %c0_15] : memref<8x32xf32, #tpu.memory_space<vmem>>, vector<8x32xf32>
    %cst_16 = arith.constant dense<0.000000e+00> : vector<8x32xf32>
    %15 = tpu.matmul %12, %13, %cst_16 {dimension_numbers = #tpu.dot_dimension_numbers<[1], [0], [0], [1], [0, 0, 1, 1], [], []>} : vector<8x64xf32>, vector<64x32xf32>, vector<8x32xf32> -> vector<8x32xf32>
    %16 = arith.addf %15, %14 : vector<8x32xf32>
    %c0_17 = arith.constant 0 : index
    %c0_18 = arith.constant 0 : index
    %17 = vector.load %arg7[%c0_17, %c0_18] : memref<8x32xf32, #tpu.memory_space<vmem>>, vector<8x32xf32>
    tpu.vector_store %arg7[%c0_17, %c0_18], %16 {strides = array<i32>} : memref<8x32xf32, #tpu.memory_space<vmem>>, vector<8x32xf32>,
    return
  }
}

</mosaic_0001>

<llo_original>
// kernel: tpu_custom_call.1
$region0: #{tpu_custom_call.1}
  #allocation0 [shape = 'u32[]', space=smem, size = 0x4, offset = 0x4, fixed_abs, tag = 'smem constant byte address 0x4 - core index']
  #allocation1 [shape = 'u32[144,128]{1,0:T(1,128)}', space=vmem, size = 0x12000, scoped, tag = 'internal scratch']
  %s0 = inlined_call_operand.hbm [shape: f32[8,32], index: 0, kind: input, shape index: {}]
  %s1 = inlined_call_operand.vmem [shape: f32[32,64], index: 1, kind: input, shape index: {}]
  %s2 = inlined_call_operand.hbm [shape: f32[8,64], index: 2, kind: input, shape index: {}]
  %s3 = inlined_call_operand.vmem [shape: f32[64,64], index: 3, kind: input, shape index: {}]
  %s4 = inlined_call_operand.hbm [shape: f32[8,64], index: 4, kind: input, shape index: {}]
  %s5 = inlined_call_operand.vmem [shape: f32[64,32], index: 5, kind: input, shape index: {}]
  %s6 = inlined_call_operand.vmem [shape: f32[8,32], index: 6, kind: input, shape index: {}]
  %s7 = inlined_call_operand.hbm [shape: f32[8,32], index: 7, kind: output, shape index: {}]
  %s8 = sld [smem:[#allocation0]]
  $region50: #{tpu_custom_call.1} parent=0
    _
  %s10 = ssub.s32 1, %s8
  %s11 = scalar_select 0, %s10, %s8
  $region1: #{tpu_custom_call.1} parent=0
    #allocation2 [shape = 'u8[4096]{0}', space=vmem, size = 0x1000, scoped, tag = 'input window, operand 0, single buffered']
    #allocation3 [shape = 's32[1]{0}', space=sflag, size = 0x4, scoped, tag = 'scoped memory for tpu_custom_call.1']
    #allocation4 [shape = 's32[1]{0}', space=sflag, size = 0x4, scoped, tag = 'scoped memory for tpu_custom_call.1']
    #allocation5 [shape = 'u8[4096]{0}', space=vmem, size = 0x1000, scoped, tag = 'input window, operand 2, single buffered']
    #allocation6 [shape = 's32[1]{0}', space=sflag, size = 0x4, scoped, tag = 'scoped memory for tpu_custom_call.1']
    #allocation7 [shape = 'u8[4096]{0}', space=vmem, size = 0x1000, scoped, tag = 'input window, operand 4, single buffered']
    #allocation8 [shape = 'u8[4096]{0}', space=vmem, size = 0x1000, scoped, tag = 'output window, operand 0, single buffered']
    %12 = vsyncpa [#allocation3], 0
    %13 = vsyncpa [#allocation6], 0
    %14 = vsyncpa [#allocation4], 0
    // Predicated region
    $region2: #{tpu_custom_call.1} parent=1 // pred_check
      _
    $region3: #{tpu_custom_call.1} parent=1 // pred_check_branch
      %16 = sbr.rel (0) target = $region5
    $region4: #{tpu_custom_call.1} parent=1 // pred_region
      %s18 = ssub.s32 128, 128
      %19 = vsyncadd [#allocation3], %s18
      %s21 = sshll.u32 [#allocation2], 4
      %s22 = int_to_ptr.vmem [resolvable:$true] %s21
      %24 = dma.hbm_to_vmem [thread:$0]  %s0, 128, %s22, [#allocation3]
    $region5: #{tpu_custom_call.1} parent=1 // pred_fallthru
      _
    // Predicated region
    $region6: #{tpu_custom_call.1} parent=1 // pred_check
      _
    $region7: #{tpu_custom_call.1} parent=1 // pred_check_branch
      %26 = sbr.rel (0) target = $region9
    $region8: #{tpu_custom_call.1} parent=1 // pred_region
      _
    $region9: #{tpu_custom_call.1} parent=1 // pred_fallthru
      _
    // Predicated region
    $region10: #{tpu_custom_call.1} parent=1 // pred_check
      _
    $region11: #{tpu_custom_call.1} parent=1 // pred_check_branch
      %28 = sbr.rel (0) target = $region13
    $region12: #{tpu_custom_call.1} parent=1 // pred_region
      %s30 = ssub.s32 128, 128
      %31 = vsyncadd [#allocation6], %s30
      %s33 = sshll.u32 [#allocation5], 4
      %s34 = int_to_ptr.vmem [resolvable:$true] %s33
      %36 = dma.hbm_to_vmem [thread:$0]  %s2, 128, %s34, [#allocation6]
    $region13: #{tpu_custom_call.1} parent=1 // pred_fallthru
      _
    // Predicated region
    $region14: #{tpu_custom_call.1} parent=1 // pred_check
      _
    $region15: #{tpu_custom_call.1} parent=1 // pred_check_branch
      %38 = sbr.rel (0) target = $region17
    $region16: #{tpu_custom_call.1} parent=1 // pred_region
      _
    $region17: #{tpu_custom_call.1} parent=1 // pred_fallthru
      _
    // Predicated region
    $region18: #{tpu_custom_call.1} parent=1 // pred_check
      _
    $region19: #{tpu_custom_call.1} parent=1 // pred_check_branch
      %40 = sbr.rel (0) target = $region21
    $region20: #{tpu_custom_call.1} parent=1 // pred_region
      %s42 = ssub.s32 128, 128
      %43 = vsyncadd [#allocation6], %s42
      %s45 = sshll.u32 [#allocation7], 4
      %s46 = int_to_ptr.vmem [resolvable:$true] %s45
      %48 = dma.hbm_to_vmem [thread:$0]  %s4, 128, %s46, [#allocation6]
    $region21: #{tpu_custom_call.1} parent=1 // pred_fallthru
      _
    // Predicated region
    $region22: #{tpu_custom_call.1} parent=1 // pred_check
      _
    $region23: #{tpu_custom_call.1} parent=1 // pred_check_branch
      %50 = sbr.rel (0) target = $region25
    $region24: #{tpu_custom_call.1} parent=1 // pred_region
      _
    $region25: #{tpu_custom_call.1} parent=1 // pred_fallthru
      _
    // Predicated region
    $region26: #{tpu_custom_call.1} parent=1 // pred_check
      _
    $region27: #{tpu_custom_call.1} parent=1 // pred_check_branch
      %52 = sbr.rel (0) target = $region29
    $region28: #{tpu_custom_call.1} parent=1 // pred_region
      _
    $region29: #{tpu_custom_call.1} parent=1 // pred_fallthru
      _
    // Predicated region
    $region30: #{tpu_custom_call.1} parent=1 // pred_check
      _
    $region31: #{tpu_custom_call.1} parent=1 // pred_check_branch
      %54 = sbr.rel (0) target = $region33
    $region32: #{tpu_custom_call.1} parent=1 // pred_region
      %55 = dma.done [#allocation3], 128
    $region33: #{tpu_custom_call.1} parent=1 // pred_fallthru
      _
    // Predicated region
    $region34: #{tpu_custom_call.1} parent=1 // pred_check
      _
    $region35: #{tpu_custom_call.1} parent=1 // pred_check_branch
      %57 = sbr.rel (0) target = $region37
    $region36: #{tpu_custom_call.1} parent=1 // pred_region
      %58 = dma.done [#allocation6], 128
    $region37: #{tpu_custom_call.1} parent=1 // pred_fallthru
      _
    // Predicated region
    $region38: #{tpu_custom_call.1} parent=1 // pred_check
      _
    $region39: #{tpu_custom_call.1} parent=1 // pred_check_branch
      %60 = sbr.rel (0) target = $region41
    $region40: #{tpu_custom_call.1} parent=1 // pred_region
      %61 = dma.done [#allocation6], 128
    $region41: #{tpu_custom_call.1} parent=1 // pred_fallthru
      _
    %v62 = vld [vmem:[#allocation2] sm:$0xff]
    %v63 = vld [vmem:[%s1] sm:$0xff]
    %v64 = vld [vmem:[%s1 + $0x8] sm:$0xff]
    %v65 = vld [vmem:[%s1 + $0x10] sm:$0xff]
    %v66 = vld [vmem:[%s1 + $0x18] sm:$0xff]
    %v67 = vld [vmem:[#allocation5] sm:$0xff]
    %vm68 = vcmask 261120
    %v70 = vsel %vm68, %v62, 0
    %72 = vmatprep.subr.mxu0 0.0
    %73 = vmatpush1.msra.mxu0 0.0
    %74 = vmatprep.subr.mxu0 0.0
    %75 = vmatpush1.msra.mxu0 0.0
    %76 = vmatprep.subr.mxu0 0.0
    %77 = vmatpush1.msra.mxu0 0.0
    %78 = vmatprep.subr.mxu0 0.0
    %79 = vmatpush1.msra.mxu0 0.0
    %80 = vmatprep.subr.mxu0 0.0
    %81 = vmatpush1.msra.mxu0 0.0
    %82 = vmatprep.subr.mxu0 0.0
    %83 = vmatpush1.msra.mxu0 0.0
    %84 = vmatprep.subr.mxu0 0.0
    %85 = vmatpush1.msra.mxu0 0.0
    %86 = vmatprep.subr.mxu0 0.0
    %87 = vmatpush1.msra.mxu0 0.0
    %88 = vmatprep.subr.mxu0 0.0
    %89 = vmatpush1.msra.mxu0 0.0
    %90 = vmatprep.subr.mxu0 0.0
    %91 = vmatpush1.msra.mxu0 0.0
    %92 = vmatprep.subr.mxu0 0.0
    %93 = vmatpush1.msra.mxu0 0.0
    %94 = vmatprep.subr.mxu0 0.0
    %95 = vmatpush1.msra.mxu0 0.0
    %96 = vmatprep.subr.mxu0 0.0
    %97 = vmatpush1.msra.mxu0 %v66
    %98 = vmatprep.subr.mxu0 0.0
    %99 = vmatpush1.msra.mxu0 %v65
    %100 = vmatprep.subr.mxu0 0.0
    %101 = vmatpush1.msra.mxu0 %v64
    %102 = vmatprep.subr.mxu0 0.0
    %103 = vmatpush1.msra.mxu0 %v63
    %104 = vmatprep.subr.mxu0 0.0
    %105 = vmatpush2.msra.mxu0 0.0
    %106 = vmatprep.subr.mxu0 0.0
    %107 = vmatpush2.msra.mxu0 0.0
    %108 = vmatprep.subr.mxu0 0.0
    %109 = vmatpush2.msra.mxu0 0.0
    %110 = vmatprep.subr.mxu0 0.0
    %111 = vmatpush2.msra.mxu0 0.0
    %112 = vmatprep.subr.mxu0 0.0
    %113 = vmatpush2.msra.mxu0 0.0
    %114 = vmatprep.subr.mxu0 0.0
    %115 = vmatpush2.msra.mxu0 0.0
    %116 = vmatprep.subr.mxu0 0.0
    %117 = vmatpush2.msra.mxu0 0.0
    %118 = vmatprep.subr.mxu0 0.0
    %119 = vmatpush2.msra.mxu0 0.0
    %120 = vmatprep.subr.mxu0 0.0
    %121 = vmatpush2.msra.mxu0 0.0
    %122 = vmatprep.subr.mxu0 0.0
    %123 = vmatpush2.msra.mxu0 0.0
    %124 = vmatprep.subr.mxu0 0.0
    %125 = vmatpush2.msra.mxu0 0.0
    %126 = vmatprep.subr.mxu0 0.0
    %127 = vmatpush2.msra.mxu0 0.0
    %128 = vmatprep.subr.mxu0 0.0
    %129 = vmatpush2.msra.mxu0 0.0
    %130 = vmatprep.subr.mxu0 0.0
    %131 = vmatpush2.msra.mxu0 0.0
    %132 = vmatprep.subr.mxu0 0.0
    %133 = vmatpush2.msra.mxu0 0.0
    %134 = vmatprep.subr.mxu0 0.0
    %135 = vmatpush2.msra.mxu0 0.0
    %136 = vmatprep.mubr.f32.mxu0 0.0
    %137 = vmatmul.mubr.f32.gmra.mxu0 %v70
    %v138 = vpop.f32.mrf.mxu0
    %v139 = vadd.f32 %v67, %v138
    %v140 = vpop.f32.mrf.mxu0
    %141 = vdwg.mxu0
    %v142 = vmax.f32 %v139, 0.0
    %v143 = vld [vmem:[%s3] sm:$0xff]
    %v144 = vld [vmem:[%s3 + $0x8] sm:$0xff]
    %v145 = vld [vmem:[%s3 + $0x10] sm:$0xff]
    %v146 = vld [vmem:[%s3 + $0x18] sm:$0xff]
    %v147 = vld [vmem:[%s3 + $0x20] sm:$0xff]
    %v148 = vld [vmem:[%s3 + $0x28] sm:$0xff]
    %v149 = vld [vmem:[%s3 + $0x30] sm:$0xff]
    %v150 = vld [vmem:[%s3 + $0x38] sm:$0xff]
    %v151 = vld [vmem:[#allocation7] sm:$0xff]
    %vm152 = vcmask 523264
    %v154 = vsel %vm152, %v142, 0
    %156 = vmatprep.subr.mxu0 0.0
    %157 = vmatpush1.msra.mxu0 0.0
    %158 = vmatprep.subr.mxu0 0.0
    %159 = vmatpush1.msra.mxu0 0.0
    %160 = vmatprep.subr.mxu0 0.0
    %161 = vmatpush1.msra.mxu0 0.0
    %162 = vmatprep.subr.mxu0 0.0
    %163 = vmatpush1.msra.mxu0 0.0
    %164 = vmatprep.subr.mxu0 0.0
    %165 = vmatpush1.msra.mxu0 0.0
    %166 = vmatprep.subr.mxu0 0.0
    %167 = vmatpush1.msra.mxu0 0.0
    %168 = vmatprep.subr.mxu0 0.0
    %169 = vmatpush1.msra.mxu0 0.0
    %170 = vmatprep.subr.mxu0 0.0
    %171 = vmatpush1.msra.mxu0 0.0
    %172 = vmatprep.subr.mxu0 0.0
    %173 = vmatpush1.msra.mxu0 %v150
    %174 = vmatprep.subr.mxu0 0.0
    %175 = vmatpush1.msra.mxu0 %v149
    %176 = vmatprep.subr.mxu0 0.0
    %177 = vmatpush1.msra.mxu0 %v148
    %178 = vmatprep.subr.mxu0 0.0
    %179 = vmatpush1.msra.mxu0 %v147
    %180 = vmatprep.subr.mxu0 0.0
    %181 = vmatpush1.msra.mxu0 %v146
    %182 = vmatprep.subr.mxu0 0.0
    %183 = vmatpush1.msra.mxu0 %v145
    %184 = vmatprep.subr.mxu0 0.0
    %185 = vmatpush1.msra.mxu0 %v144
    %186 = vmatprep.subr.mxu0 0.0
    %187 = vmatpush1.msra.mxu0 %v143
    %188 = vmatprep.subr.mxu0 0.0
    %189 = vmatpush2.msra.mxu0 0.0
    %190 = vmatprep.subr.mxu0 0.0
    %191 = vmatpush2.msra.mxu0 0.0
    %192 = vmatprep.subr.mxu0 0.0
    %193 = vmatpush2.msra.mxu0 0.0
    %194 = vmatprep.subr.mxu0 0.0
    %195 = vmatpush2.msra.mxu0 0.0
    %196 = vmatprep.subr.mxu0 0.0
    %197 = vmatpush2.msra.mxu0 0.0
    %198 = vmatprep.subr.mxu0 0.0
    %199 = vmatpush2.msra.mxu0 0.0
    %200 = vmatprep.subr.mxu0 0.0
    %201 = vmatpush2.msra.mxu0 0.0
    %202 = vmatprep.subr.mxu0 0.0
    %203 = vmatpush2.msra.mxu0 0.0
    %204 = vmatprep.subr.mxu0 0.0
    %205 = vmatpush2.msra.mxu0 0.0
    %206 = vmatprep.subr.mxu0 0.0
    %207 = vmatpush2.msra.mxu0 0.0
    %208 = vmatprep.subr.mxu0 0.0
    %209 = vmatpush2.msra.mxu0 0.0
    %210 = vmatprep.subr.mxu0 0.0
    %211 = vmatpush2.msra.mxu0 0.0
    %212 = vmatprep.subr.mxu0 0.0
    %213 = vmatpush2.msra.mxu0 0.0
    %214 = vmatprep.subr.mxu0 0.0
    %215 = vmatpush2.msra.mxu0 0.0
    %216 = vmatprep.subr.mxu0 0.0
    %217 = vmatpush2.msra.mxu0 0.0
    %218 = vmatprep.subr.mxu0 0.0
    %219 = vmatpush2.msra.mxu0 0.0
    %220 = vmatprep.mubr.f32.mxu0 0.0
    %221 = vmatmul.mubr.f32.gmra.mxu0 %v154
    %v222 = vpop.f32.mrf.mxu0
    %v223 = vadd.f32 %v151, %v222
    %v224 = vpop.f32.mrf.mxu0
    %225 = vdwg.mxu0
    %v226 = vmax.f32 %v223, 0.0
    %v227 = vld [vmem:[%s5] sm:$0xff]
    %v228 = vld [vmem:[%s5 + $0x8] sm:$0xff]
    %v229 = vld [vmem:[%s5 + $0x10] sm:$0xff]
    %v230 = vld [vmem:[%s5 + $0x18] sm:$0xff]
    %v231 = vld [vmem:[%s5 + $0x20] sm:$0xff]
    %v232 = vld [vmem:[%s5 + $0x28] sm:$0xff]
    %v233 = vld [vmem:[%s5 + $0x30] sm:$0xff]
    %v234 = vld [vmem:[%s5 + $0x38] sm:$0xff]
    %v235 = vld [vmem:[%s6] sm:$0xff]
    %v237 = vsel %vm152, %v226, 0
    %239 = vmatprep.subr.mxu0 0.0
    %240 = vmatpush1.msra.mxu0 0.0
    %241 = vmatprep.subr.mxu0 0.0
    %242 = vmatpush1.msra.mxu0 0.0
    %243 = vmatprep.subr.mxu0 0.0
    %244 = vmatpush1.msra.mxu0 0.0
    %245 = vmatprep.subr.mxu0 0.0
    %246 = vmatpush1.msra.mxu0 0.0
    %247 = vmatprep.subr.mxu0 0.0
    %248 = vmatpush1.msra.mxu0 0.0
    %249 = vmatprep.subr.mxu0 0.0
    %250 = vmatpush1.msra.mxu0 0.0
    %251 = vmatprep.subr.mxu0 0.0
    %252 = vmatpush1.msra.mxu0 0.0
    %253 = vmatprep.subr.mxu0 0.0
    %254 = vmatpush1.msra.mxu0 0.0
    %255 = vmatprep.subr.mxu0 0.0
    %256 = vmatpush1.msra.mxu0 %v234
    %257 = vmatprep.subr.mxu0 0.0
    %258 = vmatpush1.msra.mxu0 %v233
    %259 = vmatprep.subr.mxu0 0.0
    %260 = vmatpush1.msra.mxu0 %v232
    %261 = vmatprep.subr.mxu0 0.0
    %262 = vmatpush1.msra.mxu0 %v231
    %263 = vmatprep.subr.mxu0 0.0
    %264 = vmatpush1.msra.mxu0 %v230
    %265 = vmatprep.subr.mxu0 0.0
    %266 = vmatpush1.msra.mxu0 %v229
    %267 = vmatprep.subr.mxu0 0.0
    %268 = vmatpush1.msra.mxu0 %v228
    %269 = vmatprep.subr.mxu0 0.0
    %270 = vmatpush1.msra.mxu0 %v227
    %271 = vmatprep.subr.mxu0 0.0
    %272 = vmatpush2.msra.mxu0 0.0
    %273 = vmatprep.subr.mxu0 0.0
    %274 = vmatpush2.msra.mxu0 0.0
    %275 = vmatprep.subr.mxu0 0.0
    %276 = vmatpush2.msra.mxu0 0.0
    %277 = vmatprep.subr.mxu0 0.0
    %278 = vmatpush2.msra.mxu0 0.0
    %279 = vmatprep.subr.mxu0 0.0
    %280 = vmatpush2.msra.mxu0 0.0
    %281 = vmatprep.subr.mxu0 0.0
    %282 = vmatpush2.msra.mxu0 0.0
    %283 = vmatprep.subr.mxu0 0.0
    %284 = vmatpush2.msra.mxu0 0.0
    %285 = vmatprep.subr.mxu0 0.0
    %286 = vmatpush2.msra.mxu0 0.0
    %287 = vmatprep.subr.mxu0 0.0
    %288 = vmatpush2.msra.mxu0 0.0
    %289 = vmatprep.subr.mxu0 0.0
    %290 = vmatpush2.msra.mxu0 0.0
    %291 = vmatprep.subr.mxu0 0.0
    %292 = vmatpush2.msra.mxu0 0.0
    %293 = vmatprep.subr.mxu0 0.0
    %294 = vmatpush2.msra.mxu0 0.0
    %295 = vmatprep.subr.mxu0 0.0
    %296 = vmatpush2.msra.mxu0 0.0
    %297 = vmatprep.subr.mxu0 0.0
    %298 = vmatpush2.msra.mxu0 0.0
    %299 = vmatprep.subr.mxu0 0.0
    %300 = vmatpush2.msra.mxu0 0.0
    %301 = vmatprep.subr.mxu0 0.0
    %302 = vmatpush2.msra.mxu0 0.0
    %303 = vmatprep.mubr.f32.mxu0 0.0
    %304 = vmatmul.mubr.f32.gmra.mxu0 %v237
    %v305 = vpop.f32.mrf.mxu0
    %v306 = vadd.f32 %v235, %v305
    %v307 = vpop.f32.mrf.mxu0
    %308 = vdwg.mxu0
    %309 = vst.msk [vmem:[#allocation8] sm:$0xff] %vm68, %v306
    // Predicated region
    $region42: #{tpu_custom_call.1} parent=1 // pred_check
      _
    $region43: #{tpu_custom_call.1} parent=1 // pred_check_branch
      %311 = sbr.rel (0) target = $region45
    $region44: #{tpu_custom_call.1} parent=1 // pred_region
      %s313 = ssub.s32 128, 128
      %314 = vsyncadd [#allocation4], %s313
      %s316 = sshll.u32 [#allocation8], 4
      %s317 = int_to_ptr.vmem [resolvable:$true] %s316
      %319 = dma.vmem_to_hbm [thread:$0]  %s317, 128, %s7, [#allocation4]
    $region45: #{tpu_custom_call.1} parent=1 // pred_fallthru
      _
    // Predicated region
    $region46: #{tpu_custom_call.1} parent=1 // pred_check
      _
    $region47: #{tpu_custom_call.1} parent=1 // pred_check_branch
      %321 = sbr.rel (0) target = $region49
    $region48: #{tpu_custom_call.1} parent=1 // pred_region
      %322 = dma.done [#allocation4], 128
    $region49: #{tpu_custom_call.1} parent=1 // pred_fallthru
      _
    %323 = vsyncpa [#allocation3], 1
    %324 = vsyncpa [#allocation6], 1
    %325 = vsyncpa [#allocation4], 1

</llo_original>
